<compile_context>
chip_gen: v6e
topology: v6e:2x2x1
jax: 0.10.0
libtpu: 0.0.40
codegen_flags: <defaults>
</compile_context>

<pallas_src>
import functools

import jax
import jax.numpy as jnp
from jax import lax
from jax.experimental import pallas as pl
from jax.experimental.pallas import tpu as pltpu

_SMALL_C = 32  # at / below this class count use the batch-on-lanes layout


def _cot_kernel(class_axis, y_ref, x_ref, o_ref):
    """One tile of the complement-entropy partial sums.

    class_axis == 1 (class-on-lanes layout):
        y_ref (TB, 1) int32, x_ref (TB, C) logits, o_ref (TB, 1) f32
    class_axis == 0 (batch-on-lanes layout):
        y_ref (1, TL) int32, x_ref (C, TL) logits, o_ref (1, TL) f32
    Each output element is  sum_{c != y} Px * log(Px)  for one sample
    (un-normalized; the wrapper sums and divides by B*C).
    """
    x = x_ref[...].astype(jnp.float32)
    y = y_ref[...]

    # Numerically-stable shifted logits; softmax pieces kept un-normalized.
    m = jnp.max(x, axis=class_axis, keepdims=True)
    s = x - m
    e = jnp.exp(s)                                           # full-tile EUP (unavoidable)
    denom = jnp.sum(e, axis=class_axis, keepdims=True)       # softmax normalizer

    # Mask the true class out BEFORE the reductions (replaces gather/scatter_
    # and avoids subtracting two nearly-equal quantities afterwards).
    cls = lax.broadcasted_iota(jnp.int32, x.shape, class_axis)
    e_m = jnp.where(cls == y, 0.0, e)
    sum_em = jnp.sum(e_m, axis=class_axis, keepdims=True)        # sum_{c!=y} e
    sum_ems = jnp.sum(e_m * s, axis=class_axis, keepdims=True)   # sum_{c!=y} e*s

    # ---- per-sample scalars only below (exact divides; EUP/VALU have slack) ----
    # Yg_ = 1 - p_true + 1e-7 == sum_{c!=y} p_c + 1e-7 (no 1-x cancellation).
    yg_ = sum_em / denom + 1e-7
    # Px_c = e_c / (denom * yg_) ;  log Px_c = s_c - (log denom + log yg_)
    scale = 1.0 / (denom * yg_)
    shift = jnp.log(denom) + jnp.log(yg_)
    o_ref[...] = scale * (sum_ems - shift * sum_em)


def _round_up(x, m):
    return ((x + m - 1) // m) * m


def _cdiv(a, b):
    return (a + b - 1) // b


def _vmem_capacity_bytes():
    """Physical VMEM per TensorCore; conservative 64 MiB if the query fails."""
    try:
        info = pltpu.get_tpu_info()
        for attr in ("vmem_capacity_bytes", "vmem_bytes", "vmem_size_bytes"):
            cap = getattr(info, attr, None)
            if cap:
                return int(cap)
    except Exception:
        pass
    return 64 * 2**20


def _tiling_budget():
    """(per-block logits byte budget, scoped-VMEM limit) per chip generation."""
    cap = _vmem_capacity_bytes()
    if cap >= 96 * 2**20:            # v5e / v6e: 128 MiB physical VMEM
        budget, limit = 16 * 2**20, 96 * 2**20
    else:                            # v7x: 64 MiB physical VMEM per TC
        budget, limit = 10 * 2**20, 44 * 2**20
    limit = int(min(limit, max(32 * 2**20, (3 * cap) // 4)))
    return budget, limit


def _cot_large_c(logits, y, budget, vmem_limit, block_rows):
    """Class-on-lanes path: batch-tiled (TB, C) blocks, per-row partials."""
    B, C = logits.shape
    itemsize = jnp.dtype(logits.dtype).itemsize
    row_mult = max(8, 32 // itemsize)            # 8 f32 / 16 bf16 / 32 int8-fp8

    if block_rows is None:
        tb = budget // max(1, C * itemsize)
        tb = max(row_mult, min(2048, (tb // row_mult) * row_mult))
        b_ceil = _round_up(B, row_mult)
        tb = min(tb, b_ceil)
        # Keep >= 2 grid steps when B permits so the "parallel" batch axis can
        # shard across both v7x TensorCores (negligible cost on 1-TC chips).
        if b_ceil >= 2 * row_mult:
            tb = min(tb, _round_up(_cdiv(b_ceil, 2), row_mult))
    else:
        tb = max(row_mult, (block_rows // row_mult) * row_mult)
        tb = min(tb, _round_up(B, row_mult))

    b_pad = _round_up(B, tb)
    num_tiles = b_pad // tb

    y2 = y.astype(jnp.int32).reshape(B, 1)
    if b_pad != B:
        # Padded rows (zero logits, label 0) stay finite; their partials are
        # sliced away below, so no in-kernel row mask is needed.
        logits = jnp.pad(logits, ((0, b_pad - B), (0, 0)))
        y2 = jnp.pad(y2, ((0, b_pad - B), (0, 0)))

    # TODO(synk): for very large C (~1M classes under v7x's 64 MiB VMEM) add a
    # class-tiled "arbitrary" grid axis with an online running max/denominator;
    # a single full-class-row block is kept here for simplicity.
    partials = pl.pallas_call(
        functools.partial(_cot_kernel, 1),
        out_shape=jax.ShapeDtypeStruct((b_pad, 1), jnp.float32),
        grid=(num_tiles,),
        in_specs=[
            pl.BlockSpec((tb, 1), lambda i: (i, 0)),   # labels
            pl.BlockSpec((tb, C), lambda i: (i, 0)),   # logits (full class row)
        ],
        out_specs=pl.BlockSpec((tb, 1), lambda i: (i, 0)),
        compiler_params=pltpu.CompilerParams(
            dimension_semantics=("parallel",),
            vmem_limit_bytes=vmem_limit,
        ),
    )(y2, logits)
    # Output traffic ((TB,1) masked stores) is tiny vs. the (TB,C) input stream
    # in this regime; the lane-dense output treatment lives in the small-C path.
    return jnp.sum(partials[:B, 0])


def _cot_small_c(logits, y, budget, vmem_limit, block_lanes):
    """Batch-on-lanes path for tiny class counts (C <= _SMALL_C)."""
    B, C = logits.shape
    itemsize = jnp.dtype(logits.dtype).itemsize
    lane_mult = 128

    if block_lanes is None:
        tl = budget // max(1, C * itemsize)
        tl = max(lane_mult, min(8192, (tl // lane_mult) * lane_mult))
        b_ceil = _round_up(B, lane_mult)
        tl = min(tl, b_ceil)
        if b_ceil >= 2 * lane_mult:   # >= 2 tiles for v7x megacore when possible
            tl = min(tl, _round_up(_cdiv(b_ceil, 2), lane_mult))
    else:
        tl = max(lane_mult, (block_lanes // lane_mult) * lane_mult)
        tl = min(tl, _round_up(B, lane_mult))

    b_pad = _round_up(B, tl)
    num_tiles = b_pad // tl

    y2 = y.astype(jnp.int32).reshape(1, B)
    if b_pad != B:
        logits = jnp.pad(logits, ((0, b_pad - B), (0, 0)))
        y2 = jnp.pad(y2, ((0, 0), (0, b_pad - B)))
    # Layout plumbing: put the batch axis on lanes so every load / vreg / store
    # is dense (a (TB, 10) layout wastes ~92% of each vreg and pads VMEM 12.8x).
    # For small C this transpose only touches B*C*itemsize bytes.
    x_t = logits.T                                   # (C, b_pad)

    partials = pl.pallas_call(
        functools.partial(_cot_kernel, 0),
        out_shape=jax.ShapeDtypeStruct((1, b_pad), jnp.float32),
        grid=(num_tiles,),
        in_specs=[
            pl.BlockSpec((1, tl), lambda i: (0, i)),   # labels, batch on lanes
            pl.BlockSpec((C, tl), lambda i: (0, i)),   # logits, batch on lanes
        ],
        out_specs=pl.BlockSpec((1, tl), lambda i: (0, i)),   # lane-dense output
        compiler_params=pltpu.CompilerParams(
            dimension_semantics=("parallel",),
            vmem_limit_bytes=vmem_limit,
        ),
    )(y2, x_t)
    return jnp.sum(partials[0, :B])


def complement_entropy(logits, y, *, block_rows=None, block_lanes=None):
    """logits: (B, C) float (f32 or bf16, NOT pre-cast); y: (B,) integer labels."""
    B, C = logits.shape
    budget, vmem_limit = _tiling_budget()
    if C <= _SMALL_C and block_rows is None:
        total = _cot_small_c(logits, y, budget, vmem_limit, block_lanes)
    else:
        total = _cot_large_c(logits, y, budget, vmem_limit, block_rows)
    return total / (float(B) * float(C))


def _reference(logits, y):
    # Pure-JAX reference mirroring the PyTorch module exactly.
    B, C = logits.shape
    p = jax.nn.softmax(logits.astype(jnp.float32), axis=1)
    Yg = jnp.take_along_axis(p, y.reshape(B, 1).astype(jnp.int32), axis=1)
    Yg_ = 1.0 - Yg + 1e-7
    Px = p / Yg_
    Px_log = jnp.log(Px + 1e-10)
    zerohot = 1.0 - jax.nn.one_hot(y, C, dtype=jnp.float32)
    return jnp.sum(Px * Px_log * zerohot) / float(B) / float(C)


if __name__ == "__main__":
    key = jax.random.PRNGKey(0)
    k1, k2, k3, k4, k5, k6 = jax.random.split(key, 6)

    # 1) Module default classes=10 -> batch-on-lanes kernel (also exercises
    #    the batch/lane padding path since B=12 < 128).
    B1, C1 = 12, 10
    logits1 = jax.random.normal(k1, (B1, C1), dtype=jnp.float32)
    labels1 = jax.random.randint(k2, (B1,), 0, C1, dtype=jnp.int32)
    loss1 = complement_entropy(logits1, labels1)
    jax.block_until_ready(loss1)
    ref1 = _reference(logits1, labels1)
    assert jnp.allclose(loss1, ref1, atol=1e-3, rtol=1e-3), (loss1, ref1)

    # 2) Larger class count -> class-on-lanes kernel with a >=2-tile batch grid.
    B2, C2 = 48, 256
    logits2 = jax.random.normal(k3, (B2, C2), dtype=jnp.float32)
    labels2 = jax.random.randint(k4, (B2,), 0, C2, dtype=jnp.int32)
    loss2 = complement_entropy(logits2, labels2)
    jax.block_until_ready(loss2)
    ref2 = _reference(logits2, labels2)
    assert jnp.allclose(loss2, ref2, atol=1e-3, rtol=1e-3), (loss2, ref2)

    # 3) bf16 inputs + explicit small row tiles: multi-tile pipelined batch loop
    #    with in-kernel upcast (row tile rounded to bf16's 16-row packing).
    B3, C3 = 64, 256
    logits3 = jax.random.normal(k5, (B3, C3), dtype=jnp.float32).astype(jnp.bfloat16)
    labels3 = jax.random.randint(k6, (B3,), 0, C3, dtype=jnp.int32)
    loss3 = complement_entropy(logits3, labels3, block_rows=16)
    jax.block_until_ready(loss3)
    ref3 = _reference(logits3, labels3)
    assert jnp.allclose(loss3, ref3, atol=1e-3, rtol=1e-3), (loss3, ref3)

    print("KERNEL_OK")
</pallas_src>

<mosaic_0001>
module attributes {stable_mosaic.version = 11 : i64} {
  func.func @_cot_kernel(%arg0: i32, %arg1: memref<1x128xi32, #tpu.memory_space<vmem>>, %arg2: memref<10x128xf32, #tpu.memory_space<vmem>>, %arg3: memref<1x128xf32, #tpu.memory_space<vmem>>) attributes {dimension_semantics = [#tpu.dimension_semantics<parallel>], iteration_bounds = array<i64: 1>, scalar_prefetch = 0 : i64, scratch_operands = 0 : i64, tpu.core_type = #tpu.core_type<tc>, window_params = [{transform_indices = @transform_0, window_bounds = array<i64: 1, 128>}, {transform_indices = @transform_1, window_bounds = array<i64: 10, 128>}, {transform_indices = @transform_2, window_bounds = array<i64: 1, 128>}]} {
    %c0 = arith.constant 0 : index
    %c0_0 = arith.constant 0 : index
    %0 = vector.load %arg2[%c0, %c0_0] : memref<10x128xf32, #tpu.memory_space<vmem>>, vector<10x128xf32>
    %c0_1 = arith.constant 0 : index
    %c0_2 = arith.constant 0 : index
    %1 = vector.load %arg1[%c0_1, %c0_2] : memref<1x128xi32, #tpu.memory_space<vmem>>, vector<1x128xi32>
    %cst = arith.constant dense<0xFF800000> : vector<128xf32>
    %2 = vector.multi_reduction <maximumf>, %0, %cst [0] : vector<10x128xf32> to vector<128xf32>
    %3 = vector.shape_cast %2 : vector<128xf32> to vector<1x128xf32>
    %4 = vector.broadcast %3 : vector<1x128xf32> to vector<10x128xf32>
    %5 = arith.subf %0, %4 : vector<10x128xf32>
    %6 = math.exp %5 : vector<10x128xf32>
    %cst_3 = arith.constant dense<0.000000e+00> : vector<128xf32>
    %7 = vector.multi_reduction <add>, %6, %cst_3 [0] : vector<10x128xf32> to vector<128xf32>
    %8 = vector.shape_cast %7 : vector<128xf32> to vector<1x128xf32>
    %9 = tpu.iota {dimensions = array<i32: 0>} : vector<10x128xi32>
    %10 = vector.broadcast %1 : vector<1x128xi32> to vector<10x128xi32>
    %11 = arith.cmpi eq, %9, %10 : vector<10x128xi32>
    %cst_4 = arith.constant 0.000000e+00 : f32
    %12 = vector.broadcast %cst_4 : f32 to vector<10x128xf32>
    %13 = arith.select %11, %12, %6 : vector<10x128xi1>, vector<10x128xf32>
    %cst_5 = arith.constant dense<0.000000e+00> : vector<128xf32>
    %14 = vector.multi_reduction <add>, %13, %cst_5 [0] : vector<10x128xf32> to vector<128xf32>
    %15 = vector.shape_cast %14 : vector<128xf32> to vector<1x128xf32>
    %16 = arith.mulf %13, %5 : vector<10x128xf32>
    %cst_6 = arith.constant dense<0.000000e+00> : vector<128xf32>
    %17 = vector.multi_reduction <add>, %16, %cst_6 [0] : vector<10x128xf32> to vector<128xf32>
    %18 = vector.shape_cast %17 : vector<128xf32> to vector<1x128xf32>
    %19 = arith.divf %15, %8 : vector<1x128xf32>
    %cst_7 = arith.constant 1.000000e-07 : f32
    %20 = vector.broadcast %cst_7 : f32 to vector<1x128xf32>
    %21 = arith.addf %19, %20 : vector<1x128xf32>
    %22 = arith.mulf %8, %21 : vector<1x128xf32>
    %cst_8 = arith.constant 1.000000e+00 : f32
    %23 = vector.broadcast %cst_8 : f32 to vector<1x128xf32>
    %24 = arith.divf %23, %22 : vector<1x128xf32>
    %25 = math.log %8 : vector<1x128xf32>
    %26 = math.log %21 : vector<1x128xf32>
    %27 = arith.addf %25, %26 : vector<1x128xf32>
    %28 = arith.mulf %27, %15 : vector<1x128xf32>
    %29 = arith.subf %18, %28 : vector<1x128xf32>
    %30 = arith.mulf %24, %29 : vector<1x128xf32>
    %c0_9 = arith.constant 0 : index
    %c0_10 = arith.constant 0 : index
    %31 = vector.load %arg3[%c0_9, %c0_10] : memref<1x128xf32, #tpu.memory_space<vmem>>, vector<1x128xf32>
    tpu.vector_store %arg3[%c0_9, %c0_10], %30 {strides = array<i32>} : memref<1x128xf32, #tpu.memory_space<vmem>>, vector<1x128xf32>,
    return
  }
  func.func @transform_0(%arg0: i32) -> (i32, i32) {
    %c0_i32 = arith.constant 0 : i32
    %c0_i32_0 = arith.constant 0 : i32
    return %c0_i32, %arg0 : i32, i32
  }
  func.func @transform_1(%arg0: i32) -> (i32, i32) {
    %c0_i32 = arith.constant 0 : i32
    %c0_i32_0 = arith.constant 0 : i32
    return %c0_i32, %arg0 : i32, i32
  }
  func.func @transform_2(%arg0: i32) -> (i32, i32) {
    %c0_i32 = arith.constant 0 : i32
    %c0_i32_0 = arith.constant 0 : i32
    return %c0_i32, %arg0 : i32, i32
  }
}

</mosaic_0001>

<llo_original>
// kernel: tpu_custom_call.1
$region0: #{tpu_custom_call.1}
  #allocation0 [shape = 'u32[]', space=smem, size = 0x4, offset = 0x4, fixed_abs, tag = 'smem constant byte address 0x4 - core index']
  #allocation1 [shape = 'u32[144,128]{1,0:T(1,128)}', space=vmem, size = 0x12000, scoped, tag = 'internal scratch']
  %s0 = inlined_call_operand.hbm [shape: s32[1,128], index: 0, kind: input, shape index: {}]
  %s1 = inlined_call_operand.hbm [shape: f32[10,128], index: 1, kind: input, shape index: {}]
  %s2 = inlined_call_operand.hbm [shape: f32[1,128], index: 2, kind: output, shape index: {}]
  %s3 = sld [smem:[#allocation0]]
  $region26: #{tpu_custom_call.1} parent=0
    _
  %s5 = ssub.s32 1, %s3
  %s6 = scalar_select 0, %s5, %s3
  $region1: #{tpu_custom_call.1} parent=0
    #allocation2 [shape = 'u8[512]{0}', space=vmem, size = 0x400, scoped, tag = 'input window, operand 0, single buffered']
    #allocation3 [shape = 's32[1]{0}', space=sflag, size = 0x4, scoped, tag = 'scoped memory for tpu_custom_call.1']
    #allocation4 [shape = 's32[1]{0}', space=sflag, size = 0x4, scoped, tag = 'scoped memory for tpu_custom_call.1']
    #allocation5 [shape = 'u8[8192]{0}', space=vmem, size = 0x2000, scoped, tag = 'input window, operand 1, single buffered']
    #allocation6 [shape = 's32[1]{0}', space=sflag, size = 0x4, scoped, tag = 'scoped memory for tpu_custom_call.1']
    #allocation7 [shape = 'u8[512]{0}', space=vmem, size = 0x400, scoped, tag = 'output window, operand 0, single buffered']
    %7 = vsyncpa [#allocation3], 0
    %8 = vsyncpa [#allocation6], 0
    %9 = vsyncpa [#allocation4], 0
    // Predicated region
    $region2: #{tpu_custom_call.1} parent=1 // pred_check
      _
    $region3: #{tpu_custom_call.1} parent=1 // pred_check_branch
      %11 = sbr.rel (0) target = $region5
    $region4: #{tpu_custom_call.1} parent=1 // pred_region
      %s13 = ssub.s32 16, 16
      %14 = vsyncadd [#allocation3], %s13
      %s16 = sshll.u32 [#allocation2], 4
      %s17 = int_to_ptr.vmem [resolvable:$true] %s16
      %19 = dma.hbm_to_vmem [thread:$0]  %s0, 16, %s17, [#allocation3]
    $region5: #{tpu_custom_call.1} parent=1 // pred_fallthru
      _
    // Predicated region
    $region6: #{tpu_custom_call.1} parent=1 // pred_check
      _
    $region7: #{tpu_custom_call.1} parent=1 // pred_check_branch
      %21 = sbr.rel (0) target = $region9
    $region8: #{tpu_custom_call.1} parent=1 // pred_region
      %s23 = ssub.s32 256, 256
      %24 = vsyncadd [#allocation6], %s23
      %s25 = sshll.u32 [#allocation5], 4
      %s26 = int_to_ptr.vmem [resolvable:$true] %s25
      %31 = dma.hbm_to_vmem [thread:$0]  %s1, 256, %s26, [#allocation6], 128, 128, 8
    $region9: #{tpu_custom_call.1} parent=1 // pred_fallthru
      _
    // Predicated region
    $region10: #{tpu_custom_call.1} parent=1 // pred_check
      _
    $region11: #{tpu_custom_call.1} parent=1 // pred_check_branch
      %33 = sbr.rel (0) target = $region13
    $region12: #{tpu_custom_call.1} parent=1 // pred_region
      %34 = dma.done [#allocation3], 16
    $region13: #{tpu_custom_call.1} parent=1 // pred_fallthru
      _
    // Predicated region
    $region14: #{tpu_custom_call.1} parent=1 // pred_check
      _
    $region15: #{tpu_custom_call.1} parent=1 // pred_check_branch
      %36 = sbr.rel (0) target = $region17
    $region16: #{tpu_custom_call.1} parent=1 // pred_region
      %37 = dma.done [#allocation6], 256
    $region17: #{tpu_custom_call.1} parent=1 // pred_fallthru
      _
    %v38 = vld [vmem:[#allocation5] sm:$0xff]
    %v39 = vld [vmem:[#allocation5 + $0x8] sm:$0x3]
    %v40 = vld [vmem:[#allocation2] sm:$0x1]
    %vm41 = vcmask 1041408
    %v42 = vsel %vm41, %v39, -inf
    %v43 = vmax.f32 %v38, %v42
    %v44 = vrot.slane %v43, 4
    %v45 = vmax.f32 %v43, %v44
    %v46 = vrot.slane %v45, 2
    %v47 = vmax.f32 %v45, %v46
    %v48 = vrot.slane %v47, 1
    %v49 = vmax.f32 %v47, %v48
    %v50 = vsub.f32 %v38, %v49
    %v51 = vsub.f32 %v39, %v49
    %v52 = vmul.f32 %v50, 1.442695
    %v53 = vpow.pop %v52
    %v54 = vmul.f32 %v51, 1.442695
    %v55 = vpow.pop %v54
    %v56 = vsel %vm41, %v55, 0.0
    %v57 = vadd.f32 %v53, %v56
    %v58 = vrot.slane %v57, 4
    %v59 = vadd.f32 %v57, %v58
    %v60 = vrot.slane %v59, 2
    %v61 = vadd.f32 %v59, %v60
    %v62 = vrot.slane %v61, 1
    %v63 = vadd.f32 %v61, %v62
    %v64 = vlaneseq
    %v65 = vshrl.u32 %v64, 7
    %v66 = vadd.s32 %v65, 8
    %v67 = vlaneseq
    %v68 = vshrl.u32 %v67, 7
    %v69 = vsub.s32 0, %v68
    %v70 = vrot.slane %v40, %v69
    %vm71 = vcmp.eq.s32.totalorder %v65, %v70
    %vm72 = vcmp.eq.s32.totalorder %v66, %v70
    %v73 = vsel %vm71, 0.0, %v53
    %v74 = vsel %vm72, 0.0, %v55
    %v75 = vsel %vm41, %v74, 0.0
    %v76 = vadd.f32 %v73, %v75
    %v77 = vrot.slane %v76, 4
    %v78 = vadd.f32 %v76, %v77
    %v79 = vrot.slane %v78, 2
    %v80 = vadd.f32 %v78, %v79
    %v81 = vrot.slane %v80, 1
    %v82 = vadd.f32 %v80, %v81
    %v83 = vmul.f32 %v73, %v50
    %v84 = vmul.f32 %v74, %v51
    %v85 = vsel %vm41, %v84, 0.0
    %v86 = vadd.f32 %v83, %v85
    %v87 = vrot.slane %v86, 4
    %v88 = vadd.f32 %v86, %v87
    %v89 = vrot.slane %v88, 2
    %v90 = vadd.f32 %v88, %v89
    %v91 = vrot.slane %v90, 1
    %v92 = vadd.f32 %v90, %v91
    %v93 = vrcp.pop %v63
    %v94 = vmul.f32 %v82, %v93
    %v95 = vadd.f32 %v94, 1e-07
    %v96 = vmul.f32 %v63, %v95
    %v97 = vrcp.pop %v96
    %v98 = vmul.f32 1.0, %v97
    %v99 = vlog2.pop %v63
    %v100 = vmul.f32 %v99, 0.6931472
    %v101 = vlog2.pop %v95
    %v102 = vmul.f32 %v101, 0.6931472
    %v103 = vadd.f32 %v100, %v102
    %v104 = vmul.f32 %v103, %v82
    %v105 = vsub.f32 %v92, %v104
    %v106 = vmul.f32 %v98, %v105
    %107 = vst [vmem:[#allocation7] sm:$0x1] %v106
    // Predicated region
    $region18: #{tpu_custom_call.1} parent=1 // pred_check
      _
    $region19: #{tpu_custom_call.1} parent=1 // pred_check_branch
      %109 = sbr.rel (0) target = $region21
    $region20: #{tpu_custom_call.1} parent=1 // pred_region
      %s111 = ssub.s32 16, 16
      %112 = vsyncadd [#allocation4], %s111
      %s114 = sshll.u32 [#allocation7], 4
      %s115 = int_to_ptr.vmem [resolvable:$true] %s114
      %117 = dma.vmem_to_hbm [thread:$0]  %s115, 16, %s2, [#allocation4]
    $region21: #{tpu_custom_call.1} parent=1 // pred_fallthru
      _
    // Predicated region
    $region22: #{tpu_custom_call.1} parent=1 // pred_check
      _
    $region23: #{tpu_custom_call.1} parent=1 // pred_check_branch
      %119 = sbr.rel (0) target = $region25
    $region24: #{tpu_custom_call.1} parent=1 // pred_region
      %120 = dma.done [#allocation4], 16
    $region25: #{tpu_custom_call.1} parent=1 // pred_fallthru
      _
    %121 = vsyncpa [#allocation3], 1
    %122 = vsyncpa [#allocation6], 1
    %123 = vsyncpa [#allocation4], 1

</llo_original>
